<compile_context>
chip_gen: v6e
topology: v6e:2x2x1
jax: 0.10.0
libtpu: 0.0.40
codegen_flags: <defaults>
</compile_context>

<pallas_src>
import functools

import jax
import jax.numpy as jnp
from jax.experimental import pallas as pl
from jax.experimental.pallas import tpu as pltpu


def _ceil_to(n, m):
    return ((n + m - 1) // m) * m


def _self_attention_kernel(x_ref, w_ref, o_ref, *, seq_len, bps):
    """x_ref: (bps, C, LP) bf16, w_ref: (LP, 3*LP) bf16, o_ref: (bps, C, L)."""
    C = x_ref.shape[1]
    LP = x_ref.shape[2]
    L = seq_len

    # Fused QKV projection for this step's batches: (bps*C, LP) @ (LP, 3*LP).
    # The bias add is folded in: x lane L is 1.0 and w row L holds the biases.
    x = x_ref[...].reshape(bps * C, LP)                            # bf16
    qkv = jnp.dot(x, w_ref[...], preferred_element_type=jnp.float32)
    qkv = qkv.astype(jnp.bfloat16)                                 # bf16 MXU operands

    # Key-lane validity mask; hoisted out of the per-batch loop (no re-broadcast).
    key_valid = jax.lax.broadcasted_iota(jnp.int32, (L, LP), 1) < L
    neg_big = jnp.float32(-1e30)

    for b in range(bps):                                           # tiny & static
        r0 = b * C
        qb = qkv[r0:r0 + C, 0:LP]                                  # (C, LP)
        kb = qkv[r0:r0 + C, LP:2 * LP]                             # (C, LP)
        vb = qkv[r0:r0 + C, 2 * LP:3 * LP]                         # (C, LP)

        # logits = q^T @ k : contract the channel (sublane) axis of both.
        logits = jax.lax.dot_general(
            qb, kb, (((0,), (0,)), ((), ())),
            preferred_element_type=jnp.float32)                    # (LP, LP) f32

        # Only the L valid query rows matter; mask padded key lanes in f32.
        logits = jnp.where(key_valid, logits[:L, :], neg_big)      # (L, LP) f32

        # Numerically stable softmax, all in f32 (VPU + EUP).
        row_max = jnp.max(logits, axis=-1, keepdims=True)
        expv = jnp.exp(logits - row_max)
        denom = jnp.sum(expv, axis=-1, keepdims=True)
        probs = expv * pl.reciprocal(denom, approx=True)           # (L, LP) f32

        # out = v @ probs^T : contract the key (lane) axis of both operands.
        out_b = jax.lax.dot_general(
            vb, probs.astype(jnp.bfloat16), (((1,), (1,)), ((), ())),
            preferred_element_type=jnp.float32)                    # (C, L) f32
        o_ref[b, :, :] = out_b.astype(o_ref.dtype)


def prepare_self_attention_params(wq, wk, wv, bq, bk, bv,
                                  compute_dtype=jnp.bfloat16):
    """One-time parameter preparation (hoist out of the per-call path).

    Returns a fused, lane-padded (LP, 3*LP) weight buffer in `compute_dtype`:
      columns [0, LP)      : Wq^T * (1/sqrt(L))   (softmax scale folded in)
      columns [LP, 2*LP)   : Wk^T
      columns [2*LP, 3*LP) : Wv^T
    Row L holds the (scaled) biases; the wrapper sets x's lane L to 1.0 so the
    bias add happens inside the matmul.
    """
    L = wq.shape[0]
    LP = _ceil_to(L + 1, 128)           # >= L+1: keep a spare lane for the bias row
    scale = jnp.float32(1.0 / (L ** 0.5))

    w = jnp.zeros((LP, 3 * LP), jnp.float32)
    w = w.at[:L, 0:L].set(wq.T.astype(jnp.float32) * scale)
    w = w.at[:L, LP:LP + L].set(wk.T.astype(jnp.float32))
    w = w.at[:L, 2 * LP:2 * LP + L].set(wv.T.astype(jnp.float32))
    w = w.at[L, 0:L].set(bq.astype(jnp.float32) * scale)
    w = w.at[L, LP:LP + L].set(bk.astype(jnp.float32))
    w = w.at[L, 2 * LP:2 * LP + L].set(bv.astype(jnp.float32))
    return w.astype(compute_dtype)


def _batches_per_step(batch):
    """Grid gating per generation: split B across a parallel grid axis only on
    multi-TensorCore chips (v7x / v4 / v5p); on single-TC chips (v5e / v6e) the
    extra grid step would just add ~0.35us of fixed overhead."""
    try:
        kind = jax.devices()[0].device_kind.lower()
    except Exception:
        return batch
    if any(tag in kind for tag in ("v7", "7x", "v4", "v5p")):
        return 1
    return batch


def self_attention_pallas(x, w_prepared):
    """x: (B, C, L) float32; w_prepared: output of prepare_self_attention_params.
    Returns (B, C, L) in x.dtype."""
    B, C, L = x.shape
    LP = w_prepared.shape[0]
    dt = w_prepared.dtype

    # Per-call input prep only: lane-pad x to LP, cast to the compute dtype,
    # and set the bias lane (index L) to 1.0.
    x_p = jnp.zeros((B, C, LP), dt)
    x_p = x_p.at[:, :, :L].set(x.astype(dt))
    x_p = x_p.at[:, :, L].set(1.0)

    bps = _batches_per_step(B)
    if B % bps:
        bps = 1
    grid = (B // bps,)

    kernel = functools.partial(_self_attention_kernel, seq_len=L, bps=bps)

    return pl.pallas_call(
        kernel,
        out_shape=jax.ShapeDtypeStruct((B, C, L), x.dtype),
        grid_spec=pltpu.PrefetchScalarGridSpec(
            num_scalar_prefetch=0,
            grid=grid,
            in_specs=[
                pl.BlockSpec((bps, C, LP), lambda g: (g, 0, 0)),   # x slab
                pl.BlockSpec((LP, 3 * LP), lambda g: (0, 0)),      # fused W (resident)
            ],
            out_specs=pl.BlockSpec((bps, C, L), lambda g: (g, 0, 0)),
        ),
        compiler_params=pltpu.CompilerParams(
            dimension_semantics=("parallel",)),
    )(x_p, w_prepared)


def self_attention_ref(x, wq, wk, wv, bq, bk, bv):
    """Pure-JAX f32 reference mirroring the PyTorch forward."""
    L = x.shape[-1]
    scale = 1.0 / (L ** 0.5)
    q = x @ wq.T + bq
    k = x @ wk.T + bk
    v = x @ wv.T + bv
    attn = jnp.einsum('bcl,bcm->blm', q, k) * scale          # q^T @ k
    attn = jax.nn.softmax(attn, axis=-1)
    return jnp.einsum('bcl,bml->bcm', v, attn)               # v @ attn^T


if __name__ == "__main__":
    # x is (B, C, seq_len) and in_dim == seq_len (nn.Linear acts on last axis).
    B, C, in_dim = 2, 16, 32

    key = jax.random.PRNGKey(0)
    kx, kq, kk, kv, kbq, kbk, kbv = jax.random.split(key, 7)

    x = jax.random.normal(kx, (B, C, in_dim), dtype=jnp.float32)
    wq = jax.random.normal(kq, (in_dim, in_dim), dtype=jnp.float32) * 0.1
    wk = jax.random.normal(kk, (in_dim, in_dim), dtype=jnp.float32) * 0.1
    wv = jax.random.normal(kv, (in_dim, in_dim), dtype=jnp.float32) * 0.1
    bq = jax.random.normal(kbq, (in_dim,), dtype=jnp.float32) * 0.1
    bk = jax.random.normal(kbk, (in_dim,), dtype=jnp.float32) * 0.1
    bv = jax.random.normal(kbv, (in_dim,), dtype=jnp.float32) * 0.1

    # One-time parameter preparation (hoisted out of the forward path).
    w_prepared = jax.block_until_ready(
        prepare_self_attention_params(wq, wk, wv, bq, bk, bv))

    fwd = jax.jit(self_attention_pallas)
    out = jax.block_until_ready(fwd(x, w_prepared))

    ref = self_attention_ref(x, wq, wk, wv, bq, bk, bv)
    assert out.shape == (B, C, in_dim)
    max_err = float(jnp.max(jnp.abs(out - ref)))
    # bf16 MXU operands + approximate EUP reciprocal: expected max abs error is
    # a few 1e-3 at these magnitudes; tolerance leaves headroom over that.
    assert jnp.allclose(out, ref, atol=1e-2, rtol=1e-2), f"max abs err = {max_err}"

    print("KERNEL_OK")
</pallas_src>

<mosaic_0001>
module attributes {stable_mosaic.version = 11 : i64} {
  func.func @_self_attention_kernel(%arg0: i32, %arg1: memref<2x16x128xbf16, #tpu.memory_space<vmem>>, %arg2: memref<128x384xbf16, #tpu.memory_space<vmem>>, %arg3: memref<2x16x32xf32, #tpu.memory_space<vmem>>) attributes {dimension_semantics = [#tpu.dimension_semantics<parallel>], iteration_bounds = array<i64: 1>, scalar_prefetch = 0 : i64, scratch_operands = 0 : i64, tpu.core_type = #tpu.core_type<tc>, window_params = [{transform_indices = @transform_0, window_bounds = array<i64: 2, 16, 128>}, {pipeline_mode = #tpu.pipeline_mode<synchronous>, transform_indices = @transform_1, window_bounds = array<i64: 128, 384>}, {transform_indices = @transform_2, window_bounds = array<i64: 2, 16, 32>}]} {
    %c0 = arith.constant 0 : index
    %c0_0 = arith.constant 0 : index
    %c0_1 = arith.constant 0 : index
    %0 = vector.load %arg1[%c0, %c0_0, %c0_1] : memref<2x16x128xbf16, #tpu.memory_space<vmem>>, vector<2x16x128xbf16>
    %1 = vector.shape_cast %0 : vector<2x16x128xbf16> to vector<32x128xbf16>
    %c0_2 = arith.constant 0 : index
    %c0_3 = arith.constant 0 : index
    %2 = vector.load %arg2[%c0_2, %c0_3] : memref<128x384xbf16, #tpu.memory_space<vmem>>, vector<128x384xbf16>
    %cst = arith.constant dense<0.000000e+00> : vector<32x384xf32>
    %3 = tpu.matmul %1, %2, %cst {dimension_numbers = #tpu.dot_dimension_numbers<[1], [0], [0], [1], [0, 0, 1, 1], [], []>} : vector<32x128xbf16>, vector<128x384xbf16>, vector<32x384xf32> -> vector<32x384xf32>
    %4 = arith.truncf %3 : vector<32x384xf32> to vector<32x384xbf16>
    %5 = tpu.iota {dimensions = array<i32: 1>} : vector<32x128xi32>
    %c32_i32 = arith.constant 32 : i32
    %6 = vector.broadcast %c32_i32 : i32 to vector<32x128xi32>
    %7 = arith.cmpi slt, %5, %6 : vector<32x128xi32>
    %8 = vector.extract_strided_slice %4 {offsets = [0, 0], sizes = [16, 128], strides = [1, 1]} : vector<32x384xbf16> to vector<16x128xbf16>
    %9 = vector.extract_strided_slice %4 {offsets = [0, 128], sizes = [16, 128], strides = [1, 1]} : vector<32x384xbf16> to vector<16x128xbf16>
    %10 = vector.extract_strided_slice %4 {offsets = [0, 256], sizes = [16, 128], strides = [1, 1]} : vector<32x384xbf16> to vector<16x128xbf16>
    %cst_4 = arith.constant dense<0.000000e+00> : vector<128x128xf32>
    %11 = tpu.matmul %8, %9, %cst_4 {dimension_numbers = #tpu.dot_dimension_numbers<[0], [0], [1], [1], [0, 1, 1, 1], [], []>} : vector<16x128xbf16>, vector<16x128xbf16>, vector<128x128xf32> -> vector<128x128xf32>
    %12 = vector.extract_strided_slice %11 {offsets = [0, 0], sizes = [32, 128], strides = [1, 1]} : vector<128x128xf32> to vector<32x128xf32>
    %cst_5 = arith.constant -1.000000e+30 : f32
    %13 = vector.broadcast %cst_5 : f32 to vector<32x128xf32>
    %14 = arith.select %7, %12, %13 : vector<32x128xi1>, vector<32x128xf32>
    %cst_6 = arith.constant dense<0xFF800000> : vector<32xf32>
    %15 = vector.multi_reduction <maximumf>, %14, %cst_6 [1] : vector<32x128xf32> to vector<32xf32>
    %16 = vector.shape_cast %15 : vector<32xf32> to vector<32x1xf32>
    %17 = vector.broadcast %16 : vector<32x1xf32> to vector<32x128xf32>
    %18 = arith.subf %14, %17 : vector<32x128xf32>
    %19 = math.exp %18 : vector<32x128xf32>
    %cst_7 = arith.constant dense<0.000000e+00> : vector<32xf32>
    %20 = vector.multi_reduction <add>, %19, %cst_7 [1] : vector<32x128xf32> to vector<32xf32>
    %21 = vector.shape_cast %20 : vector<32xf32> to vector<32x1xf32>
    %22 = tpu.reciprocal %21 {approx = true} : vector<32x1xf32> -> vector<32x1xf32>
    %23 = vector.broadcast %22 : vector<32x1xf32> to vector<32x128xf32>
    %24 = arith.mulf %19, %23 : vector<32x128xf32>
    %25 = arith.truncf %24 : vector<32x128xf32> to vector<32x128xbf16>
    %cst_8 = arith.constant dense<0.000000e+00> : vector<16x32xf32>
    %26 = tpu.matmul %10, %25, %cst_8 {dimension_numbers = #tpu.dot_dimension_numbers<[1], [1], [0], [0], [0, 0, 1, 0], [], []>} : vector<16x128xbf16>, vector<32x128xbf16>, vector<16x32xf32> -> vector<16x32xf32>
    %c0_9 = arith.constant 0 : index
    %c0_10 = arith.constant 0 : index
    %c0_11 = arith.constant 0 : index
    %27 = vector.load %arg3[%c0_9, %c0_10, %c0_11] : memref<2x16x32xf32, #tpu.memory_space<vmem>>, vector<1x16x32xf32>
    %28 = vector.shape_cast %27 : vector<1x16x32xf32> to vector<16x32xf32>
    %29 = vector.shape_cast %26 : vector<16x32xf32> to vector<1x16x32xf32>
    tpu.vector_store %arg3[%c0_9, %c0_10, %c0_11], %29 {strides = array<i32>} : memref<2x16x32xf32, #tpu.memory_space<vmem>>, vector<1x16x32xf32>,
    %30 = vector.extract_strided_slice %4 {offsets = [16, 0], sizes = [16, 128], strides = [1, 1]} : vector<32x384xbf16> to vector<16x128xbf16>
    %31 = vector.extract_strided_slice %4 {offsets = [16, 128], sizes = [16, 128], strides = [1, 1]} : vector<32x384xbf16> to vector<16x128xbf16>
    %32 = vector.extract_strided_slice %4 {offsets = [16, 256], sizes = [16, 128], strides = [1, 1]} : vector<32x384xbf16> to vector<16x128xbf16>
    %cst_12 = arith.constant dense<0.000000e+00> : vector<128x128xf32>
    %33 = tpu.matmul %30, %31, %cst_12 {dimension_numbers = #tpu.dot_dimension_numbers<[0], [0], [1], [1], [0, 1, 1, 1], [], []>} : vector<16x128xbf16>, vector<16x128xbf16>, vector<128x128xf32> -> vector<128x128xf32>
    %34 = vector.extract_strided_slice %33 {offsets = [0, 0], sizes = [32, 128], strides = [1, 1]} : vector<128x128xf32> to vector<32x128xf32>
    %cst_13 = arith.constant -1.000000e+30 : f32
    %35 = vector.broadcast %cst_13 : f32 to vector<32x128xf32>
    %36 = arith.select %7, %34, %35 : vector<32x128xi1>, vector<32x128xf32>
    %cst_14 = arith.constant dense<0xFF800000> : vector<32xf32>
    %37 = vector.multi_reduction <maximumf>, %36, %cst_14 [1] : vector<32x128xf32> to vector<32xf32>
    %38 = vector.shape_cast %37 : vector<32xf32> to vector<32x1xf32>
    %39 = vector.broadcast %38 : vector<32x1xf32> to vector<32x128xf32>
    %40 = arith.subf %36, %39 : vector<32x128xf32>
    %41 = math.exp %40 : vector<32x128xf32>
    %cst_15 = arith.constant dense<0.000000e+00> : vector<32xf32>
    %42 = vector.multi_reduction <add>, %41, %cst_15 [1] : vector<32x128xf32> to vector<32xf32>
    %43 = vector.shape_cast %42 : vector<32xf32> to vector<32x1xf32>
    %44 = tpu.reciprocal %43 {approx = true} : vector<32x1xf32> -> vector<32x1xf32>
    %45 = vector.broadcast %44 : vector<32x1xf32> to vector<32x128xf32>
    %46 = arith.mulf %41, %45 : vector<32x128xf32>
    %47 = arith.truncf %46 : vector<32x128xf32> to vector<32x128xbf16>
    %cst_16 = arith.constant dense<0.000000e+00> : vector<16x32xf32>
    %48 = tpu.matmul %32, %47, %cst_16 {dimension_numbers = #tpu.dot_dimension_numbers<[1], [1], [0], [0], [0, 0, 1, 0], [], []>} : vector<16x128xbf16>, vector<32x128xbf16>, vector<16x32xf32> -> vector<16x32xf32>
    %c1 = arith.constant 1 : index
    %c0_17 = arith.constant 0 : index
    %c0_18 = arith.constant 0 : index
    %49 = vector.load %arg3[%c1, %c0_17, %c0_18] : memref<2x16x32xf32, #tpu.memory_space<vmem>>, vector<1x16x32xf32>
    %50 = vector.shape_cast %49 : vector<1x16x32xf32> to vector<16x32xf32>
    %51 = vector.shape_cast %48 : vector<16x32xf32> to vector<1x16x32xf32>
    tpu.vector_store %arg3[%c1, %c0_17, %c0_18], %51 {strides = array<i32>} : memref<2x16x32xf32, #tpu.memory_space<vmem>>, vector<1x16x32xf32>,
    return
  }
  func.func @transform_0(%arg0: i32) -> (i32, i32, i32) {
    %c0_i32 = arith.constant 0 : i32
    %c0_i32_0 = arith.constant 0 : i32
    %c0_i32_1 = arith.constant 0 : i32
    return %arg0, %c0_i32, %c0_i32_0 : i32, i32, i32
  }
  func.func @transform_1(%arg0: i32) -> (i32, i32) {
    %c0_i32 = arith.constant 0 : i32
    %c0_i32_0 = arith.constant 0 : i32
    %c0_i32_1 = arith.constant 0 : i32
    return %c0_i32, %c0_i32_0 : i32, i32
  }
  func.func @transform_2(%arg0: i32) -> (i32, i32, i32) {
    %c0_i32 = arith.constant 0 : i32
    %c0_i32_0 = arith.constant 0 : i32
    %c0_i32_1 = arith.constant 0 : i32
    return %arg0, %c0_i32, %c0_i32_0 : i32, i32, i32
  }
}

</mosaic_0001>

<llo_original>
// kernel: self_attention_pallas.1
$region0: #{self_attention_pallas.1}
  #allocation0 [shape = 'u32[]', space=smem, size = 0x4, offset = 0x4, fixed_abs, tag = 'smem constant byte address 0x4 - core index']
  #allocation1 [shape = 'u32[144,128]{1,0:T(1,128)}', space=vmem, size = 0x12000, scoped, tag = 'internal scratch']
  %s0 = inlined_call_operand.vmem [shape: bf16[2,16,128], index: 0, kind: input, shape index: {}]
  %s1 = inlined_call_operand.hbm [shape: bf16[128,384], index: 1, kind: input, shape index: {}]
  %s2 = inlined_call_operand.hbm [shape: f32[2,16,32], index: 2, kind: output, shape index: {}]
  %s3 = sld [smem:[#allocation0]]
  $region22: #{self_attention_pallas.1} parent=0
    _
  %s5 = ssub.s32 1, %s3
  %s6 = scalar_select 0, %s5, %s3
  $region1: #{self_attention_pallas.1} parent=0
    #allocation2 [shape = 'u8[98304]{0}', space=vmem, size = 0x18000, scoped, tag = 'input window, operand 1, single buffered']
    #allocation3 [shape = 's32[1]{0}', space=sflag, size = 0x4, scoped, tag = 'scoped memory for self_attention_pallas.1']
    #allocation4 [shape = 's32[1]{0}', space=sflag, size = 0x4, scoped, tag = 'scoped memory for self_attention_pallas.1']
    #allocation5 [shape = 'u8[16384]{0}', space=vmem, size = 0x4000, scoped, tag = 'output window, operand 0, single buffered']
    %7 = vsyncpa [#allocation3], 0
    %8 = vsyncpa [#allocation4], 0
    // Predicated region
    $region2: #{self_attention_pallas.1} parent=1 // pred_check
      _
    $region3: #{self_attention_pallas.1} parent=1 // pred_check_branch
      %10 = sbr.rel (0) target = $region5
    $region4: #{self_attention_pallas.1} parent=1 // pred_region
      _
    $region5: #{self_attention_pallas.1} parent=1 // pred_fallthru
      _
    // Predicated region
    $region6: #{self_attention_pallas.1} parent=1 // pred_check
      _
    $region7: #{self_attention_pallas.1} parent=1 // pred_check_branch
      %12 = sbr.rel (0) target = $region9
    $region8: #{self_attention_pallas.1} parent=1 // pred_region
      %s14 = ssub.s32 3072, 3072
      %15 = vsyncadd [#allocation3], %s14
      %s16 = sshll.u32 [#allocation2], 4
      %s17 = int_to_ptr.vmem [resolvable:$true] %s16
      %22 = dma.hbm_to_vmem [thread:$0]  %s1, 3072, %s17, [#allocation3], 192, 192, 12
    $region9: #{self_attention_pallas.1} parent=1 // pred_fallthru
      _
    // Predicated region
    $region10: #{self_attention_pallas.1} parent=1 // pred_check
      _
    $region11: #{self_attention_pallas.1} parent=1 // pred_check_branch
      %24 = sbr.rel (0) target = $region13
    $region12: #{self_attention_pallas.1} parent=1 // pred_region
      %25 = dma.done [#allocation3], 3072
    $region13: #{self_attention_pallas.1} parent=1 // pred_fallthru
      _
    %v27 = vld [vmem:[%s0] sm:$0xf]
    %v28 = vld [vmem:[%s0 + $0x4] sm:$0xf]
    %v29 = vld [vmem:[%s0 + $0x8] sm:$0xf]
    %v30 = vld [vmem:[%s0 + $0xc] sm:$0xf]
    %v31 = vld [vmem:[#allocation2] sm:$0xff]
    %v32 = vld [vmem:[#allocation2 + $0x8] sm:$0xf]
    %v33 = vld [vmem:[#allocation2 + $0xc] sm:$0xff]
    %v34 = vld [vmem:[#allocation2 + $0x14] sm:$0xf]
    %v35 = vld [vmem:[#allocation2 + $0x18] sm:$0xff]
    %v36 = vld [vmem:[#allocation2 + $0x20] sm:$0xf]
    %v37 = vld [vmem:[#allocation2 + $0x24] sm:$0xff]
    %v38 = vld [vmem:[#allocation2 + $0x2c] sm:$0xf]
    %v39 = vld [vmem:[#allocation2 + $0x30] sm:$0xff]
    %v40 = vld [vmem:[#allocation2 + $0x38] sm:$0xf]
    %v41 = vld [vmem:[#allocation2 + $0x3c] sm:$0xff]
    %v42 = vld [vmem:[#allocation2 + $0x44] sm:$0xf]
    %v43 = vld [vmem:[#allocation2 + $0x48] sm:$0xff]
    %v44 = vld [vmem:[#allocation2 + $0x50] sm:$0xf]
    %v45 = vld [vmem:[#allocation2 + $0x54] sm:$0xff]
    %v46 = vld [vmem:[#allocation2 + $0x5c] sm:$0xf]
    %v47 = vld [vmem:[#allocation2 + $0x60] sm:$0xff]
    %v48 = vld [vmem:[#allocation2 + $0x68] sm:$0xf]
    %v49 = vld [vmem:[#allocation2 + $0x6c] sm:$0xff]
    %v50 = vld [vmem:[#allocation2 + $0x74] sm:$0xf]
    %v51 = vld [vmem:[#allocation2 + $0x78] sm:$0xff]
    %v52 = vld [vmem:[#allocation2 + $0x80] sm:$0xf]
    %v53 = vld [vmem:[#allocation2 + $0x84] sm:$0xff]
    %v54 = vld [vmem:[#allocation2 + $0x8c] sm:$0xf]
    %v55 = vld [vmem:[#allocation2 + $0x90] sm:$0xff]
    %v56 = vld [vmem:[#allocation2 + $0x98] sm:$0xf]
    %v57 = vld [vmem:[#allocation2 + $0x9c] sm:$0xff]
    %v58 = vld [vmem:[#allocation2 + $0xa4] sm:$0xf]
    %v59 = vld [vmem:[#allocation2 + $0xa8] sm:$0xff]
    %v60 = vld [vmem:[#allocation2 + $0xb0] sm:$0xf]
    %v61 = vld [vmem:[#allocation2 + $0xb4] sm:$0xff]
    %v62 = vld [vmem:[#allocation2 + $0xbc] sm:$0xf]
    %v67 = vunpack.c.l.b16 %v27
    %v68 = vunpack.c.l.b16 %v28
    %v69 = vunpack.c.l.b16 %v29
    %v70 = vunpack.c.l.b16 %v30
    %v71 = vpack.c.b16 %v68, %v67
    %v72 = vpack.c.b16 %v70, %v69
    %v107 = vunpack.c.l.b16 %v31
    %v108 = vunpack.c.h.b16 %v31
    %v109 = vunpack.c.l.b16 %v32
    %v110 = vunpack.c.l.b16 %v33
    %v111 = vunpack.c.h.b16 %v33
    %v112 = vunpack.c.l.b16 %v34
    %v113 = vunpack.c.l.b16 %v35
    %v114 = vunpack.c.h.b16 %v35
    %v115 = vunpack.c.l.b16 %v36
    %v116 = vunpack.c.l.b16 %v37
    %v117 = vunpack.c.h.b16 %v37
    %v118 = vunpack.c.l.b16 %v38
    %v119 = vunpack.c.l.b16 %v39
    %v120 = vunpack.c.h.b16 %v39
    %v121 = vunpack.c.l.b16 %v40
    %v122 = vunpack.c.l.b16 %v41
    %v123 = vunpack.c.h.b16 %v41
    %v124 = vunpack.c.l.b16 %v42
    %v125 = vunpack.c.l.b16 %v43
    %v126 = vunpack.c.h.b16 %v43
    %v127 = vunpack.c.l.b16 %v44
    %v128 = vunpack.c.l.b16 %v45
    %v129 = vunpack.c.h.b16 %v45
    %v130 = vunpack.c.l.b16 %v46
    %v131 = vunpack.c.l.b16 %v47
    %v132 = vunpack.c.h.b16 %v47
    %v133 = vunpack.c.l.b16 %v48
    %v134 = vunpack.c.l.b16 %v49
    %v135 = vunpack.c.h.b16 %v49
    %v136 = vunpack.c.l.b16 %v50
    %v137 = vunpack.c.l.b16 %v51
    %v138 = vunpack.c.h.b16 %v51
    %v139 = vunpack.c.l.b16 %v52
    %v140 = vunpack.c.l.b16 %v53
    %v141 = vunpack.c.h.b16 %v53
    %v142 = vunpack.c.l.b16 %v54
    %v143 = vunpack.c.l.b16 %v55
    %v144 = vunpack.c.h.b16 %v55
    %v145 = vunpack.c.l.b16 %v56
    %v146 = vunpack.c.l.b16 %v57
    %v147 = vunpack.c.h.b16 %v57
    %v148 = vunpack.c.l.b16 %v58
    %v149 = vunpack.c.l.b16 %v59
    %v150 = vunpack.c.h.b16 %v59
    %v151 = vunpack.c.l.b16 %v60
    %v152 = vunpack.c.l.b16 %v61
    %v153 = vunpack.c.h.b16 %v61
    %v154 = vunpack.c.l.b16 %v62
    %v155 = vpack.c.b16 %v110, %v107
    %v156 = vpack.c.b16 %v111, %v108
    %v157 = vpack.c.b16 %v112, %v109
    %v158 = vpack.c.b16 %v116, %v113
    %v159 = vpack.c.b16 %v117, %v114
    %v160 = vpack.c.b16 %v118, %v115
    %v161 = vpack.c.b16 %v122, %v119
    %v162 = vpack.c.b16 %v123, %v120
    %v163 = vpack.c.b16 %v124, %v121
    %v164 = vpack.c.b16 %v128, %v125
    %v165 = vpack.c.b16 %v129, %v126
    %v166 = vpack.c.b16 %v130, %v127
    %v167 = vpack.c.b16 %v134, %v131
    %v168 = vpack.c.b16 %v135, %v132
    %v169 = vpack.c.b16 %v136, %v133
    %v170 = vpack.c.b16 %v140, %v137
    %v171 = vpack.c.b16 %v141, %v138
    %v172 = vpack.c.b16 %v142, %v139
    %v173 = vpack.c.b16 %v146, %v143
    %v174 = vpack.c.b16 %v147, %v144
    %v175 = vpack.c.b16 %v148, %v145
    %v176 = vpack.c.b16 %v152, %v149
    %v177 = vpack.c.b16 %v153, %v150
    %v178 = vpack.c.b16 %v154, %v151
    %203 = vmatprep.subr.bf16.mxu0 %v177
    %204 = vmatpush1.bf16.msra.mxu0 %v176
    %205 = vmatprep.subr.bf16.mxu0 %v174
    %206 = vmatpush1.bf16.msra.mxu0 %v173
    %207 = vmatprep.subr.bf16.mxu0 %v171
    %208 = vmatpush1.bf16.msra.mxu0 %v170
    %209 = vmatprep.subr.bf16.mxu0 %v168
    %210 = vmatpush1.bf16.msra.mxu0 %v167
    %211 = vmatprep.subr.bf16.mxu0 %v165
    %212 = vmatpush1.bf16.msra.mxu0 %v164
    %213 = vmatprep.subr.bf16.mxu0 %v162
    %214 = vmatpush1.bf16.msra.mxu0 %v161
    %215 = vmatprep.subr.bf16.mxu0 %v159
    %216 = vmatpush1.bf16.msra.mxu0 %v158
    %217 = vmatprep.subr.bf16.mxu0 %v156
    %218 = vmatpush1.bf16.msra.mxu0 %v155
    %219 = vmatprep.subr.bf16.mxu0 0
    %220 = vmatpush2.bf16.msra.mxu0 0
    %221 = vmatprep.subr.bf16.mxu0 0
    %222 = vmatpush2.bf16.msra.mxu0 0
    %223 = vmatprep.subr.bf16.mxu0 0
    %224 = vmatpush2.bf16.msra.mxu0 0
    %225 = vmatprep.subr.bf16.mxu0 0
    %226 = vmatpush2.bf16.msra.mxu0 0
    %227 = vmatprep.subr.bf16.mxu0 0
    %228 = vmatpush2.bf16.msra.mxu0 0
    %229 = vmatprep.subr.bf16.mxu0 0
    %230 = vmatpush2.bf16.msra.mxu0 0
    %231 = vmatprep.subr.bf16.mxu0 0
    %232 = vmatpush2.bf16.msra.mxu0 0
    %233 = vmatprep.subr.bf16.mxu0 0
    %234 = vmatpush2.bf16.msra.mxu0 0
    %235 = vmatprep.mubr.bf16.mxu0 0
    %236 = vmatmul.mubr.bf16.gmra.mxu0 %v71
    %v237 = vpop.f32.mrf.mxu0
    %v238 = vadd.f32 0.0, %v237
    %v239 = vpop.f32.mrf.mxu0
    %v240 = vadd.f32 0.0, %v239
    %v241 = vpop.f32.mrf.mxu0
    %v242 = vadd.f32 0.0, %v241
    %v243 = vpop.f32.mrf.mxu0
    %v244 = vadd.f32 0.0, %v243
    %245 = vmatprep.mubr.bf16.mxu0 0
    %246 = vmatmul.mubr.bf16.gmra.mxu0 %v72
    %v247 = vpop.f32.mrf.mxu0
    %v248 = vadd.f32 0.0, %v247
    %v249 = vpop.f32.mrf.mxu0
    %v250 = vadd.f32 0.0, %v249
    %v251 = vpop.f32.mrf.mxu0
    %v252 = vadd.f32 0.0, %v251
    %v253 = vpop.f32.mrf.mxu0
    %v254 = vadd.f32 0.0, %v253
    %255 = vdwg.mxu0
    %256 = vmatprep.subr.bf16.mxu0 0
    %257 = vmatpush1.bf16.msra.mxu0 %v178
    %258 = vmatprep.subr.bf16.mxu0 0
    %259 = vmatpush1.bf16.msra.mxu0 %v175
    %260 = vmatprep.subr.bf16.mxu0 0
    %261 = vmatpush1.bf16.msra.mxu0 %v172
    %262 = vmatprep.subr.bf16.mxu0 0
    %263 = vmatpush1.bf16.msra.mxu0 %v169
    %264 = vmatprep.subr.bf16.mxu0 0
    %265 = vmatpush1.bf16.msra.mxu0 %v166
    %266 = vmatprep.subr.bf16.mxu0 0
    %267 = vmatpush1.bf16.msra.mxu0 %v163
    %268 = vmatprep.subr.bf16.mxu0 0
    %269 = vmatpush1.bf16.msra.mxu0 %v160
    %270 = vmatprep.subr.bf16.mxu0 0
    %271 = vmatpush1.bf16.msra.mxu0 %v157
    %272 = vmatprep.subr.bf16.mxu0 0
    %273 = vmatpush2.bf16.msra.mxu0 0
    %274 = vmatprep.subr.bf16.mxu0 0
    %275 = vmatpush2.bf16.msra.mxu0 0
    %276 = vmatprep.subr.bf16.mxu0 0
    %277 = vmatpush2.bf16.msra.mxu0 0
    %278 = vmatprep.subr.bf16.mxu0 0
    %279 = vmatpush2.bf16.msra.mxu0 0
    %280 = vmatprep.subr.bf16.mxu0 0
    %281 = vmatpush2.bf16.msra.mxu0 0
    %282 = vmatprep.subr.bf16.mxu0 0
    %283 = vmatpush2.bf16.msra.mxu0 0
    %284 = vmatprep.subr.bf16.mxu0 0
    %285 = vmatpush2.bf16.msra.mxu0 0
    %286 = vmatprep.subr.bf16.mxu0 0
    %287 = vmatpush2.bf16.msra.mxu0 0
    %288 = vmatprep.mubr.bf16.mxu0 0
    %289 = vmatmul.mubr.bf16.gmra.mxu0 %v71
    %v290 = vpop.f32.mrf.mxu0
    %v291 = vadd.f32 0.0, %v290
    %v292 = vpop.f32.mrf.mxu0
    %v293 = vpop.f32.mrf.mxu0
    %v294 = vadd.f32 0.0, %v293
    %v295 = vpop.f32.mrf.mxu0
    %296 = vmatprep.mubr.bf16.mxu0 0
    %297 = vmatmul.mubr.bf16.gmra.mxu0 %v72
    %v298 = vpop.f32.mrf.mxu0
    %v299 = vadd.f32 0.0, %v298
    %v300 = vpop.f32.mrf.mxu0
    %v301 = vpop.f32.mrf.mxu0
    %v302 = vadd.f32 0.0, %v301
    %v303 = vpop.f32.mrf.mxu0
    %304 = vdwg.mxu0
    %v305 = vpack.c.bf16 %v242, %v238
    %v306 = vpack.c.bf16 %v244, %v240
    %v307 = vpack.c.bf16 %v294, %v291
    %v308 = vpack.c.bf16 %v252, %v248
    %v309 = vpack.c.bf16 %v254, %v250
    %v310 = vpack.c.bf16 %v302, %v299
    %v311 = vlaneseq
    %v312 = vand.u32 %v311, 127
    %vm313 = vcmp.lt.s32.totalorder %v312, 32
    %314 = vxpose.xlu0.c.b16.start [1/8] %v305, 128
    %315 = vxpose.xlu0.c.b16.cont [2/8] 0, 128
    %316 = vxpose.xlu0.c.b16.cont [3/8] 0, 128
    %317 = vxpose.xlu0.c.b16.cont [4/8] 0, 128
    %318 = vxpose.xlu0.c.b16.cont [5/8] 0, 128
    %319 = vxpose.xlu0.c.b16.cont [6/8] 0, 128
    %320 = vxpose.xlu0.c.b16.cont [7/8] 0, 128
    %321 = vxpose.xlu0.c.b16.end [8/8] 0, 128
    %v322 = vpop.trf.xlu0
    %v323 = vpop.trf.xlu0
    %v324 = vpop.trf.xlu0
    %v325 = vpop.trf.xlu0
    %v326 = vpop.trf.xlu0
    %v327 = vpop.trf.xlu0
    %v328 = vpop.trf.xlu0
    %v329 = vpop.trf.xlu0
    %vm330 = vcmask 130048
    %v332 = vsel %vm330, %v322, 0
    %v335 = vsel %vm330, %v323, 0
    %v338 = vsel %vm330, %v324, 0
    %v341 = vsel %vm330, %v325, 0
    %v344 = vsel %vm330, %v326, 0
    %v347 = vsel %vm330, %v327, 0
    %v350 = vsel %vm330, %v328, 0
    %v353 = vsel %vm330, %v329, 0
    %355 = vmatprep.subr.bf16.mxu0 0
    %356 = vmatpush1.bf16.msra.mxu0 0
    %357 = vmatprep.subr.bf16.mxu0 0
    %358 = vmatpush1.bf16.msra.mxu0 0
    %359 = vmatprep.subr.bf16.mxu0 0
    %360 = vmatpush1.bf16.msra.mxu0 0
    %361 = vmatprep.subr.bf16.mxu0 0
    %362 = vmatpush1.bf16.msra.mxu0 0
    %363 = vmatprep.subr.bf16.mxu0 0
    %364 = vmatpush1.bf16.msra.mxu0 0
    %365 = vmatprep.subr.bf16.mxu0 0
    %366 = vmatpush1.bf16.msra.mxu0 0
    %367 = vmatprep.subr.bf16.mxu0 0
    %368 = vmatpush1.bf16.msra.mxu0 0
    %369 = vmatprep.subr.bf16.mxu0 0
    %370 = vmatpush1.bf16.msra.mxu0 %v306
    %371 = vmatprep.subr.bf16.mxu0 0
    %372 = vmatpush2.bf16.msra.mxu0 0
    %373 = vmatprep.subr.bf16.mxu0 0
    %374 = vmatpush2.bf16.msra.mxu0 0
    %375 = vmatprep.subr.bf16.mxu0 0
    %376 = vmatpush2.bf16.msra.mxu0 0
    %377 = vmatprep.subr.bf16.mxu0 0
    %378 = vmatpush2.bf16.msra.mxu0 0
    %379 = vmatprep.subr.bf16.mxu0 0
    %380 = vmatpush2.bf16.msra.mxu0 0
    %381 = vmatprep.subr.bf16.mxu0 0
    %382 = vmatpush2.bf16.msra.mxu0 0
    %383 = vmatprep.subr.bf16.mxu0 0
    %384 = vmatpush2.bf16.msra.mxu0 0
    %385 = vmatprep.subr.bf16.mxu0 0
    %386 = vmatpush2.bf16.msra.mxu0 0
    %387 = vmatprep.mubr.bf16.mxu0 0
    %388 = vmatmul.mubr.bf16.gmra.mxu0 %v332
    %v389 = vpop.f32.mrf.mxu0
    %v390 = vadd.f32 0.0, %v389
    %v391 = vpop.f32.mrf.mxu0
    %v392 = vpop.f32.mrf.mxu0
    %v393 = vadd.f32 0.0, %v392
    %v394 = vpop.f32.mrf.mxu0
    %395 = vmatprep.mubr.bf16.mxu0 0
    %396 = vmatmul.mubr.bf16.gmra.mxu0 %v335
    %v397 = vpop.f32.mrf.mxu0
    %v398 = vadd.f32 0.0, %v397
    %v399 = vpop.f32.mrf.mxu0
    %v400 = vpop.f32.mrf.mxu0
    %v401 = vadd.f32 0.0, %v400
    %v402 = vpop.f32.mrf.mxu0
    %403 = vmatprep.mubr.bf16.mxu0 0
    %404 = vmatmul.mubr.bf16.gmra.mxu0 %v338
    %v405 = vpop.f32.mrf.mxu0
    %v406 = vpop.f32.mrf.mxu0
    %v407 = vpop.f32.mrf.mxu0
    %v408 = vpop.f32.mrf.mxu0
    %409 = vmatprep.mubr.bf16.mxu0 0
    %410 = vmatmul.mubr.bf16.gmra.mxu0 %v341
    %v411 = vpop.f32.mrf.mxu0
    %v412 = vpop.f32.mrf.mxu0
    %v413 = vpop.f32.mrf.mxu0
    %v414 = vpop.f32.mrf.mxu0
    %415 = vmatprep.mubr.bf16.mxu0 0
    %416 = vmatmul.mubr.bf16.gmra.mxu0 %v344
    %v417 = vpop.f32.mrf.mxu0
    %v418 = vpop.f32.mrf.mxu0
    %v419 = vpop.f32.mrf.mxu0
    %v420 = vpop.f32.mrf.mxu0
    %421 = vmatprep.mubr.bf16.mxu0 0
    %422 = vmatmul.mubr.bf16.gmra.mxu0 %v347
    %v423 = vpop.f32.mrf.mxu0
    %v424 = vpop.f32.mrf.mxu0
    %v425 = vpop.f32.mrf.mxu0
    %v426 = vpop.f32.mrf.mxu0
    %427 = vmatprep.mubr.bf16.mxu0 0
    %428 = vmatmul.mubr.bf16.gmra.mxu0 %v350
    %v429 = vpop.f32.mrf.mxu0
    %v430 = vpop.f32.mrf.mxu0
    %v431 = vpop.f32.mrf.mxu0
    %v432 = vpop.f32.mrf.mxu0
    %433 = vmatprep.mubr.bf16.mxu0 0
    %434 = vmatmul.mubr.bf16.gmra.mxu0 %v353
    %v435 = vpop.f32.mrf.mxu0
    %v436 = vpop.f32.mrf.mxu0
    %v437 = vpop.f32.mrf.mxu0
    %v438 = vpop.f32.mrf.mxu0
    %439 = vdwg.mxu0
    %v440 = vsel %vm313, %v390, -1e+30
    %v441 = vsel %vm313, %v393, -1e+30
    %v442 = vsel %vm313, %v398, -1e+30
    %v443 = vsel %vm313, %v401, -1e+30
    %444 = vmax.xlane.f32.xlu0 %v440
    %v445 = vpop.xlane.xlu0 %444
    %446 = vmax.xlane.f32.xlu0 %v441
    %v447 = vpop.xlane.xlu0 %446
    %448 = vmax.xlane.f32.xlu0 %v442
    %v449 = vpop.xlane.xlu0 %448
    %450 = vmax.xlane.f32.xlu0 %v443
    %v451 = vpop.xlane.xlu0 %450
    %v452 = vsub.f32 %v440, %v445
    %v453 = vsub.f32 %v441, %v447
    %v454 = vsub.f32 %v442, %v449
    %v455 = vsub.f32 %v443, %v451
    %v456 = vmul.f32 %v452, 1.442695
    %v457 = vpow.pop %v456
    %v458 = vmul.f32 %v453, 1.442695
    %v459 = vpow.pop %v458
    %v460 = vmul.f32 %v454, 1.442695
    %v461 = vpow.pop %v460
    %v462 = vmul.f32 %v455, 1.442695
    %v463 = vpow.pop %v462
    %464 = vadd.xlane.f32.xlu0 %v457
    %v465 = vpop.xlane.xlu0 %464
    %466 = vadd.xlane.f32.xlu0 %v459
    %v467 = vpop.xlane.xlu0 %466
    %468 = vadd.xlane.f32.xlu0 %v461
    %v469 = vpop.xlane.xlu0 %468
    %470 = vadd.xlane.f32.xlu0 %v463
    %v471 = vpop.xlane.xlu0 %470
    %v472 = vrcp.pop %v465
    %v473 = vrcp.pop %v467
    %v474 = vrcp.pop %v469
    %v475 = vrcp.pop %v471
    %v476 = vmul.f32 %v457, %v472
    %v477 = vmul.f32 %v459, %v473
    %v478 = vmul.f32 %v461, %v474
    %v479 = vmul.f32 %v463, %v475
    %v480 = vpack.c.bf16 %v477, %v476
    %v481 = vpack.c.bf16 %v479, %v478
    %482 = vmatprep.subr.bf16.mxu0 0
    %483 = vmatpush1.bf16.xpose.msra.mxu0 0
    %484 = vmatprep.subr.bf16.mxu0 0
    %485 = vmatpush1.bf16.xpose.msra.mxu0 0
    %486 = vmatprep.subr.bf16.mxu0 0
    %487 = vmatpush1.bf16.xpose.msra.mxu0 0
    %488 = vmatprep.subr.bf16.mxu0 0
    %489 = vmatpush1.bf16.xpose.msra.mxu0 0
    %490 = vmatprep.subr.bf16.mxu0 0
    %491 = vmatpush1.bf16.xpose.msra.mxu0 0
    %492 = vmatprep.subr.bf16.mxu0 0
    %493 = vmatpush1.bf16.xpose.msra.mxu0 0
    %494 = vmatprep.subr.bf16.mxu0 0
    %495 = vmatpush1.bf16.xpose.msra.mxu0 %v481
    %496 = vmatprep.subr.bf16.mxu0 0
    %497 = vmatpush1.bf16.xpose.msra.mxu0 %v480
    %498 = vmatprep.subr.bf16.mxu0 0
    %499 = vmatpush2.bf16.xpose.msra.mxu0 0
    %500 = vmatprep.subr.bf16.mxu0 0
    %501 = vmatpush2.bf16.xpose.msra.mxu0 0
    %502 = vmatprep.subr.bf16.mxu0 0
    %503 = vmatpush2.bf16.xpose.msra.mxu0 0
    %504 = vmatprep.subr.bf16.mxu0 0
    %505 = vmatpush2.bf16.xpose.msra.mxu0 0
    %506 = vmatprep.subr.bf16.mxu0 0
    %507 = vmatpush2.bf16.xpose.msra.mxu0 0
    %508 = vmatprep.subr.bf16.mxu0 0
    %509 = vmatpush2.bf16.xpose.msra.mxu0 0
    %510 = vmatprep.subr.bf16.mxu0 0
    %511 = vmatpush2.bf16.xpose.msra.mxu0 0
    %512 = vmatprep.subr.bf16.mxu0 0
    %513 = vmatpush2.bf16.xpose.msra.mxu0 0
    %514 = vmatprep.mubr.bf16.mxu0 0
    %515 = vmatmul.mubr.bf16.gmra.mxu0 %v307
    %v516 = vpop.f32.mrf.mxu0
    %v517 = vadd.f32 0.0, %v516
    %v518 = vpop.f32.mrf.mxu0
    %v519 = vpop.f32.mrf.mxu0
    %v520 = vadd.f32 0.0, %v519
    %v521 = vpop.f32.mrf.mxu0
    %522 = vdwg.mxu0
    %vm523 = vcmask 261120
    %524 = vst.msk [vmem:[#allocation5] sm:$0xff] %vm523, %v517
    %525 = vst.msk [vmem:[#allocation5 + $0x8] sm:$0xff] %vm523, %v520
    %526 = vxpose.xlu0.c.b16.start [1/8] %v308, 128
    %527 = vxpose.xlu0.c.b16.cont [2/8] 0, 128
    %528 = vxpose.xlu0.c.b16.cont [3/8] 0, 128
    %529 = vxpose.xlu0.c.b16.cont [4/8] 0, 128
    %530 = vxpose.xlu0.c.b16.cont [5/8] 0, 128
    %531 = vxpose.xlu0.c.b16.cont [6/8] 0, 128
    %532 = vxpose.xlu0.c.b16.cont [7/8] 0, 128
    %533 = vxpose.xlu0.c.b16.end [8/8] 0, 128
    %v534 = vpop.trf.xlu0
    %v535 = vpop.trf.xlu0
    %v536 = vpop.trf.xlu0
    %v537 = vpop.trf.xlu0
    %v538 = vpop.trf.xlu0
    %v539 = vpop.trf.xlu0
    %v540 = vpop.trf.xlu0
    %v541 = vpop.trf.xlu0
    %v543 = vsel %vm330, %v534, 0
    %v546 = vsel %vm330, %v535, 0
    %v549 = vsel %vm330, %v536, 0
    %v552 = vsel %vm330, %v537, 0
    %v555 = vsel %vm330, %v538, 0
    %v558 = vsel %vm330, %v539, 0
    %v561 = vsel %vm330, %v540, 0
    %v564 = vsel %vm330, %v541, 0
    %566 = vmatprep.subr.bf16.mxu0 0
    %567 = vmatpush1.bf16.msra.mxu0 0
    %568 = vmatprep.subr.bf16.mxu0 0
    %569 = vmatpush1.bf16.msra.mxu0 0
    %570 = vmatprep.subr.bf16.mxu0 0
    %571 = vmatpush1.bf16.msra.mxu0 0
    %572 = vmatprep.subr.bf16.mxu0 0
    %573 = vmatpush1.bf16.msra.mxu0 0
    %574 = vmatprep.subr.bf16.mxu0 0
    %575 = vmatpush1.bf16.msra.mxu0 0
    %576 = vmatprep.subr.bf16.mxu0 0
    %577 = vmatpush1.bf16.msra.mxu0 0
    %578 = vmatprep.subr.bf16.mxu0 0
    %579 = vmatpush1.bf16.msra.mxu0 0
    %580 = vmatprep.subr.bf16.mxu0 0
    %581 = vmatpush1.bf16.msra.mxu0 %v309
    %582 = vmatprep.subr.bf16.mxu0 0
    %583 = vmatpush2.bf16.msra.mxu0 0
    %584 = vmatprep.subr.bf16.mxu0 0
    %585 = vmatpush2.bf16.msra.mxu0 0
    %586 = vmatprep.subr.bf16.mxu0 0
    %587 = vmatpush2.bf16.msra.mxu0 0
    %588 = vmatprep.subr.bf16.mxu0 0
    %589 = vmatpush2.bf16.msra.mxu0 0
    %590 = vmatprep.subr.bf16.mxu0 0
    %591 = vmatpush2.bf16.msra.mxu0 0
    %592 = vmatprep.subr.bf16.mxu0 0
    %593 = vmatpush2.bf16.msra.mxu0 0
    %594 = vmatprep.subr.bf16.mxu0 0
    %595 = vmatpush2.bf16.msra.mxu0 0
    %596 = vmatprep.subr.bf16.mxu0 0
    %597 = vmatpush2.bf16.msra.mxu0 0
    %598 = vmatprep.mubr.bf16.mxu0 0
    %599 = vmatmul.mubr.bf16.gmra.mxu0 %v543
    %v600 = vpop.f32.mrf.mxu0
    %v601 = vadd.f32 0.0, %v600
    %v602 = vpop.f32.mrf.mxu0
    %v603 = vpop.f32.mrf.mxu0
    %v604 = vadd.f32 0.0, %v603
    %v605 = vpop.f32.mrf.mxu0
    %606 = vmatprep.mubr.bf16.mxu0 0
    %607 = vmatmul.mubr.bf16.gmra.mxu0 %v546
    %v608 = vpop.f32.mrf.mxu0
    %v609 = vadd.f32 0.0, %v608
    %v610 = vpop.f32.mrf.mxu0
    %v611 = vpop.f32.mrf.mxu0
    %v612 = vadd.f32 0.0, %v611
    %v613 = vpop.f32.mrf.mxu0
    %614 = vmatprep.mubr.bf16.mxu0 0
    %615 = vmatmul.mubr.bf16.gmra.mxu0 %v549
    %v616 = vpop.f32.mrf.mxu0
    %v617 = vpop.f32.mrf.mxu0
    %v618 = vpop.f32.mrf.mxu0
    %v619 = vpop.f32.mrf.mxu0
    %620 = vmatprep.mubr.bf16.mxu0 0
    %621 = vmatmul.mubr.bf16.gmra.mxu0 %v552
    %v622 = vpop.f32.mrf.mxu0
    %v623 = vpop.f32.mrf.mxu0
    %v624 = vpop.f32.mrf.mxu0
    %v625 = vpop.f32.mrf.mxu0
    %626 = vmatprep.mubr.bf16.mxu0 0
    %627 = vmatmul.mubr.bf16.gmra.mxu0 %v555
    %v628 = vpop.f32.mrf.mxu0
    %v629 = vpop.f32.mrf.mxu0
    %v630 = vpop.f32.mrf.mxu0
    %v631 = vpop.f32.mrf.mxu0
    %632 = vmatprep.mubr.bf16.mxu0 0
    %633 = vmatmul.mubr.bf16.gmra.mxu0 %v558
    %v634 = vpop.f32.mrf.mxu0
    %v635 = vpop.f32.mrf.mxu0
    %v636 = vpop.f32.mrf.mxu0
    %v637 = vpop.f32.mrf.mxu0
    %638 = vmatprep.mubr.bf16.mxu0 0
    %639 = vmatmul.mubr.bf16.gmra.mxu0 %v561
    %v640 = vpop.f32.mrf.mxu0
    %v641 = vpop.f32.mrf.mxu0
    %v642 = vpop.f32.mrf.mxu0
    %v643 = vpop.f32.mrf.mxu0
    %644 = vmatprep.mubr.bf16.mxu0 0
    %645 = vmatmul.mubr.bf16.gmra.mxu0 %v564
    %v646 = vpop.f32.mrf.mxu0
    %v647 = vpop.f32.mrf.mxu0
    %v648 = vpop.f32.mrf.mxu0
    %v649 = vpop.f32.mrf.mxu0
    %650 = vdwg.mxu0
    %v651 = vsel %vm313, %v601, -1e+30
    %v652 = vsel %vm313, %v604, -1e+30
    %v653 = vsel %vm313, %v609, -1e+30
    %v654 = vsel %vm313, %v612, -1e+30
    %655 = vmax.xlane.f32.xlu0 %v651
    %v656 = vpop.xlane.xlu0 %655
    %657 = vmax.xlane.f32.xlu0 %v652
    %v658 = vpop.xlane.xlu0 %657
    %659 = vmax.xlane.f32.xlu0 %v653
    %v660 = vpop.xlane.xlu0 %659
    %661 = vmax.xlane.f32.xlu0 %v654
    %v662 = vpop.xlane.xlu0 %661
    %v663 = vsub.f32 %v651, %v656
    %v664 = vsub.f32 %v652, %v658
    %v665 = vsub.f32 %v653, %v660
    %v666 = vsub.f32 %v654, %v662
    %v667 = vmul.f32 %v663, 1.442695
    %v668 = vpow.pop %v667
    %v669 = vmul.f32 %v664, 1.442695
    %v670 = vpow.pop %v669
    %v671 = vmul.f32 %v665, 1.442695
    %v672 = vpow.pop %v671
    %v673 = vmul.f32 %v666, 1.442695
    %v674 = vpow.pop %v673
    %675 = vadd.xlane.f32.xlu0 %v668
    %v676 = vpop.xlane.xlu0 %675
    %677 = vadd.xlane.f32.xlu0 %v670
    %v678 = vpop.xlane.xlu0 %677
    %679 = vadd.xlane.f32.xlu0 %v672
    %v680 = vpop.xlane.xlu0 %679
    %681 = vadd.xlane.f32.xlu0 %v674
    %v682 = vpop.xlane.xlu0 %681
    %v683 = vrcp.pop %v676
    %v684 = vrcp.pop %v678
    %v685 = vrcp.pop %v680
    %v686 = vrcp.pop %v682
    %v687 = vmul.f32 %v668, %v683
    %v688 = vmul.f32 %v670, %v684
    %v689 = vmul.f32 %v672, %v685
    %v690 = vmul.f32 %v674, %v686
    %v691 = vpack.c.bf16 %v688, %v687
    %v692 = vpack.c.bf16 %v690, %v689
    %693 = vmatprep.subr.bf16.mxu0 0
    %694 = vmatpush1.bf16.xpose.msra.mxu0 0
    %695 = vmatprep.subr.bf16.mxu0 0
    %696 = vmatpush1.bf16.xpose.msra.mxu0 0
    %697 = vmatprep.subr.bf16.mxu0 0
    %698 = vmatpush1.bf16.xpose.msra.mxu0 0
    %699 = vmatprep.subr.bf16.mxu0 0
    %700 = vmatpush1.bf16.xpose.msra.mxu0 0
    %701 = vmatprep.subr.bf16.mxu0 0
    %702 = vmatpush1.bf16.xpose.msra.mxu0 0
    %703 = vmatprep.subr.bf16.mxu0 0
    %704 = vmatpush1.bf16.xpose.msra.mxu0 0
    %705 = vmatprep.subr.bf16.mxu0 0
    %706 = vmatpush1.bf16.xpose.msra.mxu0 %v692
    %707 = vmatprep.subr.bf16.mxu0 0
    %708 = vmatpush1.bf16.xpose.msra.mxu0 %v691
    %709 = vmatprep.subr.bf16.mxu0 0
    %710 = vmatpush2.bf16.xpose.msra.mxu0 0
    %711 = vmatprep.subr.bf16.mxu0 0
    %712 = vmatpush2.bf16.xpose.msra.mxu0 0
    %713 = vmatprep.subr.bf16.mxu0 0
    %714 = vmatpush2.bf16.xpose.msra.mxu0 0
    %715 = vmatprep.subr.bf16.mxu0 0
    %716 = vmatpush2.bf16.xpose.msra.mxu0 0
    %717 = vmatprep.subr.bf16.mxu0 0
    %718 = vmatpush2.bf16.xpose.msra.mxu0 0
    %719 = vmatprep.subr.bf16.mxu0 0
    %720 = vmatpush2.bf16.xpose.msra.mxu0 0
    %721 = vmatprep.subr.bf16.mxu0 0
    %722 = vmatpush2.bf16.xpose.msra.mxu0 0
    %723 = vmatprep.subr.bf16.mxu0 0
    %724 = vmatpush2.bf16.xpose.msra.mxu0 0
    %725 = vmatprep.mubr.bf16.mxu0 0
    %726 = vmatmul.mubr.bf16.gmra.mxu0 %v310
    %v727 = vpop.f32.mrf.mxu0
    %v728 = vadd.f32 0.0, %v727
    %v729 = vpop.f32.mrf.mxu0
    %v730 = vpop.f32.mrf.mxu0
    %v731 = vadd.f32 0.0, %v730
    %v732 = vpop.f32.mrf.mxu0
    %733 = vdwg.mxu0
    %s734 = scalar_lea.vmem [#allocation5], 16
    %735 = vst.msk [vmem:[%s734] sm:$0xff] %vm523, %v728
    %736 = vst.msk [vmem:[%s734 + $0x8] sm:$0xff] %vm523, %v731
    // Predicated region
    $region14: #{self_attention_pallas.1} parent=1 // pred_check
      _
    $region15: #{self_attention_pallas.1} parent=1 // pred_check_branch
      %738 = sbr.rel (0) target = $region17
    $region16: #{self_attention_pallas.1} parent=1 // pred_region
      %s740 = ssub.s32 512, 512
      %741 = vsyncadd [#allocation4], %s740
      %s742 = sshll.u32 [#allocation5], 4
      %s743 = int_to_ptr.vmem [resolvable:$true] %s742
      %748 = dma.vmem_to_hbm [thread:$0]  %s743, 512, %s2, [#allocation4], 128, 128, 8
    $region17: #{self_attention_pallas.1} parent=1 // pred_fallthru
      _
    // Predicated region
    $region18: #{self_attention_pallas.1} parent=1 // pred_check
      _
    $region19: #{self_attention_pallas.1} parent=1 // pred_check_branch
      %750 = sbr.rel (0) target = $region21
    $region20: #{self_attention_pallas.1} parent=1 // pred_region
      %751 = dma.done [#allocation4], 512
    $region21: #{self_attention_pallas.1} parent=1 // pred_fallthru
      _
    %752 = vsyncpa [#allocation3], 1
    %753 = vsyncpa [#allocation4], 1

</llo_original>
